<compile_context>
chip_gen: v6e
topology: v6e:2x2x1
jax: 0.10.0
libtpu: 0.0.40
codegen_flags: <defaults>
</compile_context>

<pallas_src>
import jax
import jax.numpy as jnp
from jax.experimental import pallas as pl
from jax.experimental.pallas import tpu as pltpu


def _round_up(v, m):
    return ((v + m - 1) // m) * m


def _make_densenet_kernel(tb, chunk):
    """Build the kernel body for a TB-row batch tile.

    If the tile is large enough (and divisible by `chunk`), process it in
    row sub-chunks so the fc1 intermediate's live range is bounded to
    (chunk, hid) instead of (TB, hid).
    """
    use_chunks = chunk is not None and tb > chunk and tb % chunk == 0

    def kernel(x_ref, w1_ref, b1_ref, w2_ref, b2_ref, o_ref):
        if not use_chunks:
            # fc1: (TB, in_f) @ (in_f, hid) + (1, hid)
            h = jnp.dot(x_ref[...], w1_ref[...],
                        preferred_element_type=jnp.float32) + b1_ref[...]
            # fc2: (TB, hid) @ (hid, out_f) + (1, out_f)
            y = jnp.dot(h, w2_ref[...],
                        preferred_element_type=jnp.float32) + b2_ref[...]
            o_ref[...] = y.astype(o_ref.dtype)
        else:
            n_chunks = tb // chunk

            def body(c, carry):
                r = pl.multiple_of(c * chunk, chunk)
                xs = x_ref[pl.ds(r, chunk), :]
                h = jnp.dot(xs, w1_ref[...],
                            preferred_element_type=jnp.float32) + b1_ref[...]
                y = jnp.dot(h, w2_ref[...],
                            preferred_element_type=jnp.float32) + b2_ref[...]
                o_ref[pl.ds(r, chunk), :] = y.astype(o_ref.dtype)
                return carry

            # Real loop (not unrolled): bounds live ranges; per-iteration
            # matmul work dwarfs the loop overhead.
            jax.lax.fori_loop(0, n_chunks, body, 0)

    return kernel


def densenet_forward(x, w1, b1, w2, b2, *, tb=4096, chunk=256):
    """x: [B, ...] -> flattened to [B, inputFeature]; returns [B, projDim]."""
    B = x.shape[0]
    xf = x.reshape(B, -1)                       # torch.flatten(x, start_dim=1)
    in_f = xf.shape[1]
    hid = w1.shape[1]
    out_f = w2.shape[1]
    assert w1.shape == (in_f, hid) and w2.shape == (hid, out_f)

    b1_2d = b1.reshape(1, hid)
    b2_2d = b2.reshape(1, out_f)

    # --- Batch tile selection -------------------------------------------
    # Tiny batches: one step (splitting a handful of rows buys nothing).
    # Moderate batches (B <= 2*tb): split into >=2 steps so the "parallel"
    # grid axis can shard across both v7x TensorCores.
    # Large batches: fixed sublane-aligned tile of tb rows.
    if B <= 16:
        TB = B
    elif B <= 2 * tb:
        TB = max(8, _round_up(pl.cdiv(B, 2), 8))
    else:
        TB = max(8, (tb // 8) * 8)
    grid = (pl.cdiv(B, TB),)

    use_chunks = chunk is not None and TB > chunk and TB % chunk == 0
    h_rows = chunk if use_chunks else TB

    # --- Explicit VMEM budget --------------------------------------------
    # 2x double-buffered x tile + 2x out tile + fc1 intermediate (bounded to
    # one chunk when chunking) + resident weights/biases, with 2x headroom,
    # capped at ~3/4 of this generation's physical VMEM.
    itemsize = 4  # f32
    work_bytes = (
        2 * TB * in_f * itemsize
        + 2 * TB * out_f * itemsize
        + h_rows * hid * itemsize
        + (in_f * hid + hid * out_f + hid + out_f) * itemsize
    )
    try:
        info = pltpu.get_tpu_info()
        vmem_phys = int(getattr(info, "vmem_capacity_bytes", 64 << 20))
    except Exception:
        vmem_phys = 64 << 20                    # conservative (v7x per-TC)
    vmem_cap = max(32 << 20, (vmem_phys * 3) // 4)
    vmem_limit = int(min(max(2 * work_bytes, 16 << 20), vmem_cap))

    cost = pl.CostEstimate(
        flops=2 * B * (in_f * hid + hid * out_f),
        transcendentals=0,
        bytes_accessed=(
            B * in_f * itemsize                       # x
            + (in_f * hid + hid * out_f) * itemsize   # W1, W2 (grid-resident)
            + (hid + out_f) * itemsize                # b1, b2 (grid-resident)
            + B * out_f * itemsize                    # out
        ),
    )

    kernel = _make_densenet_kernel(TB, chunk)

    return pl.pallas_call(
        kernel,
        out_shape=jax.ShapeDtypeStruct((B, out_f), xf.dtype),
        grid=grid,
        in_specs=[
            pl.BlockSpec((TB, in_f), lambda i: (i, 0)),    # x tile (pipelined)
            pl.BlockSpec((in_f, hid), lambda i: (0, 0)),   # W1 (resident)
            pl.BlockSpec((1, hid), lambda i: (0, 0)),      # b1 (resident)
            pl.BlockSpec((hid, out_f), lambda i: (0, 0)),  # W2 (resident)
            pl.BlockSpec((1, out_f), lambda i: (0, 0)),    # b2 (resident)
        ],
        out_specs=pl.BlockSpec((TB, out_f), lambda i: (i, 0)),
        compiler_params=pltpu.CompilerParams(
            dimension_semantics=("parallel",),
            vmem_limit_bytes=vmem_limit,
        ),
        cost_estimate=cost,
    )(xf, w1, b1_2d, w2, b2_2d)


def init_params(key, input_feature=448, proj_dim=128, hidden=256):
    """Deterministic init mimicking torch.nn.Linear default (uniform +-1/sqrt(fan_in)).

    Weights returned already transposed to [in, out] for the kernel.
    """
    k1, k2, k3, k4 = jax.random.split(key, 4)
    bound1 = 1.0 / (input_feature ** 0.5)
    bound2 = 1.0 / (hidden ** 0.5)
    w1 = jax.random.uniform(k1, (input_feature, hidden), jnp.float32, -bound1, bound1)
    b1 = jax.random.uniform(k2, (hidden,), jnp.float32, -bound1, bound1)
    w2 = jax.random.uniform(k3, (hidden, proj_dim), jnp.float32, -bound2, bound2)
    b2 = jax.random.uniform(k4, (proj_dim,), jnp.float32, -bound2, bound2)
    return w1, b1, w2, b2


if __name__ == "__main__":
    key = jax.random.PRNGKey(0)
    kx, kp, kx2, kx3 = jax.random.split(key, 4)

    # inputFeature=448 -> e.g. an unflattened [B, 7, 8, 8] input (7*8*8 = 448)
    B, input_feature, proj_dim = 2, 448, 128
    x = jax.random.normal(kx, (B, 7, 8, 8), dtype=jnp.float32)
    w1, b1, w2, b2 = init_params(kp, input_feature, proj_dim)

    def ref_fwd(xa):
        xf = xa.reshape(xa.shape[0], -1)
        return (xf @ w1 + b1) @ w2 + b2

    # 1) Tiny batch: single grid step, simple (un-chunked) body.
    out = jax.block_until_ready(densenet_forward(x, w1, b1, w2, b2))
    assert out.shape == (B, proj_dim)
    assert jnp.allclose(out, ref_fwd(x), atol=1e-3, rtol=1e-3)

    # 2) Multi-step grid with a partial last tile (20 = 8 + 8 + 4 rows).
    B2 = 20
    x2 = jax.random.normal(kx2, (B2, 7, 8, 8), dtype=jnp.float32)
    out2 = jax.block_until_ready(densenet_forward(x2, w1, b1, w2, b2, tb=8))
    assert out2.shape == (B2, proj_dim)
    assert jnp.allclose(out2, ref_fwd(x2), atol=1e-3, rtol=1e-3)

    # 3) Larger batch: >=2 grid steps (keeps both v7x cores busy) and the
    #    in-kernel 256-row chunked fori_loop path (TB=512 -> 2 chunks).
    B3 = 1024
    x3 = jax.random.normal(kx3, (B3, 7, 8, 8), dtype=jnp.float32)
    out3 = jax.block_until_ready(densenet_forward(x3, w1, b1, w2, b2, tb=1024))
    assert out3.shape == (B3, proj_dim)
    assert jnp.allclose(out3, ref_fwd(x3), atol=1e-3, rtol=1e-3)

    print("KERNEL_OK")
</pallas_src>

<mosaic_0001>
module attributes {stable_mosaic.version = 11 : i64} {
  func.func @kernel(%arg0: i32, %arg1: memref<2x448xf32, #tpu.memory_space<vmem>>, %arg2: memref<448x256xf32, #tpu.memory_space<vmem>>, %arg3: memref<1x256xf32, #tpu.memory_space<vmem>>, %arg4: memref<256x128xf32, #tpu.memory_space<vmem>>, %arg5: memref<1x128xf32, #tpu.memory_space<vmem>>, %arg6: memref<2x128xf32, #tpu.memory_space<vmem>>) attributes {dimension_semantics = [#tpu.dimension_semantics<parallel>], iteration_bounds = array<i64: 1>, scalar_prefetch = 0 : i64, scratch_operands = 0 : i64, tpu.core_type = #tpu.core_type<tc>, window_params = [{transform_indices = @transform_0, window_bounds = array<i64: 2, 448>}, {pipeline_mode = #tpu.pipeline_mode<synchronous>, transform_indices = @transform_1, window_bounds = array<i64: 448, 256>}, {pipeline_mode = #tpu.pipeline_mode<synchronous>, transform_indices = @transform_2, window_bounds = array<i64: 1, 256>}, {pipeline_mode = #tpu.pipeline_mode<synchronous>, transform_indices = @transform_3, window_bounds = array<i64: 256, 128>}, {pipeline_mode = #tpu.pipeline_mode<synchronous>, transform_indices = @transform_4, window_bounds = array<i64: 1, 128>}, {transform_indices = @transform_5, window_bounds = array<i64: 2, 128>}]} {
    %c0 = arith.constant 0 : index
    %c0_0 = arith.constant 0 : index
    %0 = vector.load %arg1[%c0, %c0_0] : memref<2x448xf32, #tpu.memory_space<vmem>>, vector<2x448xf32>
    %c0_1 = arith.constant 0 : index
    %c0_2 = arith.constant 0 : index
    %1 = vector.load %arg2[%c0_1, %c0_2] : memref<448x256xf32, #tpu.memory_space<vmem>>, vector<448x256xf32>
    %cst = arith.constant dense<0.000000e+00> : vector<2x256xf32>
    %2 = tpu.matmul %0, %1, %cst {dimension_numbers = #tpu.dot_dimension_numbers<[1], [0], [0], [1], [0, 0, 1, 1], [], []>} : vector<2x448xf32>, vector<448x256xf32>, vector<2x256xf32> -> vector<2x256xf32>
    %c0_3 = arith.constant 0 : index
    %c0_4 = arith.constant 0 : index
    %3 = vector.load %arg3[%c0_3, %c0_4] : memref<1x256xf32, #tpu.memory_space<vmem>>, vector<1x256xf32>
    %4 = vector.broadcast %3 : vector<1x256xf32> to vector<2x256xf32>
    %5 = arith.addf %2, %4 : vector<2x256xf32>
    %c0_5 = arith.constant 0 : index
    %c0_6 = arith.constant 0 : index
    %6 = vector.load %arg4[%c0_5, %c0_6] : memref<256x128xf32, #tpu.memory_space<vmem>>, vector<256x128xf32>
    %cst_7 = arith.constant dense<0.000000e+00> : vector<2x128xf32>
    %7 = tpu.matmul %5, %6, %cst_7 {dimension_numbers = #tpu.dot_dimension_numbers<[1], [0], [0], [1], [0, 0, 1, 1], [], []>} : vector<2x256xf32>, vector<256x128xf32>, vector<2x128xf32> -> vector<2x128xf32>
    %c0_8 = arith.constant 0 : index
    %c0_9 = arith.constant 0 : index
    %8 = vector.load %arg5[%c0_8, %c0_9] : memref<1x128xf32, #tpu.memory_space<vmem>>, vector<1x128xf32>
    %9 = vector.broadcast %8 : vector<1x128xf32> to vector<2x128xf32>
    %10 = arith.addf %7, %9 : vector<2x128xf32>
    %c0_10 = arith.constant 0 : index
    %c0_11 = arith.constant 0 : index
    %11 = vector.load %arg6[%c0_10, %c0_11] : memref<2x128xf32, #tpu.memory_space<vmem>>, vector<2x128xf32>
    tpu.vector_store %arg6[%c0_10, %c0_11], %10 {strides = array<i32>} : memref<2x128xf32, #tpu.memory_space<vmem>>, vector<2x128xf32>,
    return
  }
  func.func @transform_0(%arg0: i32) -> (i32, i32) {
    %c0_i32 = arith.constant 0 : i32
    %c0_i32_0 = arith.constant 0 : i32
    return %arg0, %c0_i32 : i32, i32
  }
  func.func @transform_1(%arg0: i32) -> (i32, i32) {
    %c0_i32 = arith.constant 0 : i32
    %c0_i32_0 = arith.constant 0 : i32
    %c0_i32_1 = arith.constant 0 : i32
    return %c0_i32, %c0_i32_0 : i32, i32
  }
  func.func @transform_2(%arg0: i32) -> (i32, i32) {
    %c0_i32 = arith.constant 0 : i32
    %c0_i32_0 = arith.constant 0 : i32
    %c0_i32_1 = arith.constant 0 : i32
    return %c0_i32, %c0_i32_0 : i32, i32
  }
  func.func @transform_3(%arg0: i32) -> (i32, i32) {
    %c0_i32 = arith.constant 0 : i32
    %c0_i32_0 = arith.constant 0 : i32
    %c0_i32_1 = arith.constant 0 : i32
    return %c0_i32, %c0_i32_0 : i32, i32
  }
  func.func @transform_4(%arg0: i32) -> (i32, i32) {
    %c0_i32 = arith.constant 0 : i32
    %c0_i32_0 = arith.constant 0 : i32
    %c0_i32_1 = arith.constant 0 : i32
    return %c0_i32, %c0_i32_0 : i32, i32
  }
  func.func @transform_5(%arg0: i32) -> (i32, i32) {
    %c0_i32 = arith.constant 0 : i32
    %c0_i32_0 = arith.constant 0 : i32
    return %arg0, %c0_i32 : i32, i32
  }
}

</mosaic_0001>

<llo_original>
// kernel: tpu_custom_call.1
$region0: #{tpu_custom_call.1}
  #allocation0 [shape = 'u32[]', space=smem, size = 0x4, offset = 0x4, fixed_abs, tag = 'smem constant byte address 0x4 - core index']
  #allocation1 [shape = 'u32[144,128]{1,0:T(1,128)}', space=vmem, size = 0x12000, scoped, tag = 'internal scratch']
  %s0 = inlined_call_operand.hbm [shape: f32[2,448], index: 0, kind: input, shape index: {}]
  %s1 = inlined_call_operand.hbm [shape: f32[448,256], index: 1, kind: input, shape index: {}]
  %s2 = inlined_call_operand.vmem [shape: f32[1,256], index: 2, kind: input, shape index: {}]
  %s3 = inlined_call_operand.hbm [shape: f32[256,128], index: 3, kind: input, shape index: {}]
  %s4 = inlined_call_operand.vmem [shape: f32[1,128], index: 4, kind: input, shape index: {}]
  %s5 = inlined_call_operand.hbm [shape: f32[2,128], index: 5, kind: output, shape index: {}]
  %s6 = sld [smem:[#allocation0]]
  $region42: #{tpu_custom_call.1} parent=0
    _
  %s8 = ssub.s32 1, %s6
  %s9 = scalar_select 0, %s8, %s6
  $region1: #{tpu_custom_call.1} parent=0
    #allocation2 [shape = 'u8[4096]{0}', space=vmem, size = 0x1000, scoped, tag = 'input window, operand 0, single buffered']
    #allocation3 [shape = 's32[1]{0}', space=sflag, size = 0x4, scoped, tag = 'scoped memory for tpu_custom_call.1']
    #allocation4 [shape = 's32[1]{0}', space=sflag, size = 0x4, scoped, tag = 'scoped memory for tpu_custom_call.1']
    #allocation5 [shape = 'u8[458752]{0}', space=vmem, size = 0x70000, scoped, tag = 'input window, operand 1, single buffered']
    #allocation6 [shape = 's32[1]{0}', space=sflag, size = 0x4, scoped, tag = 'scoped memory for tpu_custom_call.1']
    #allocation7 [shape = 'u8[131072]{0}', space=vmem, size = 0x20000, scoped, tag = 'input window, operand 3, single buffered']
    #allocation8 [shape = 'u8[1024]{0}', space=vmem, size = 0x400, scoped, tag = 'output window, operand 0, single buffered']
    %10 = vsyncpa [#allocation3], 0
    %11 = vsyncpa [#allocation6], 0
    %12 = vsyncpa [#allocation4], 0
    // Predicated region
    $region2: #{tpu_custom_call.1} parent=1 // pred_check
      _
    $region3: #{tpu_custom_call.1} parent=1 // pred_check_branch
      %14 = sbr.rel (0) target = $region5
    $region4: #{tpu_custom_call.1} parent=1 // pred_region
      %s16 = ssub.s32 128, 128
      %17 = vsyncadd [#allocation3], %s16
      %s19 = sshll.u32 [#allocation2], 4
      %s20 = int_to_ptr.vmem [resolvable:$true] %s19
      %22 = dma.hbm_to_vmem [thread:$0]  %s0, 128, %s20, [#allocation3]
    $region5: #{tpu_custom_call.1} parent=1 // pred_fallthru
      _
    // Predicated region
    $region6: #{tpu_custom_call.1} parent=1 // pred_check
      _
    $region7: #{tpu_custom_call.1} parent=1 // pred_check_branch
      %24 = sbr.rel (0) target = $region9
    $region8: #{tpu_custom_call.1} parent=1 // pred_region
      %s26 = ssub.s32 14336, 14336
      %27 = vsyncadd [#allocation6], %s26
      %s28 = sshll.u32 [#allocation5], 4
      %s29 = int_to_ptr.vmem [resolvable:$true] %s28
      %34 = dma.hbm_to_vmem [thread:$0]  %s1, 14336, %s29, [#allocation6], 256, 256, 16
    $region9: #{tpu_custom_call.1} parent=1 // pred_fallthru
      _
    // Predicated region
    $region10: #{tpu_custom_call.1} parent=1 // pred_check
      _
    $region11: #{tpu_custom_call.1} parent=1 // pred_check_branch
      %36 = sbr.rel (0) target = $region13
    $region12: #{tpu_custom_call.1} parent=1 // pred_region
      _
    $region13: #{tpu_custom_call.1} parent=1 // pred_fallthru
      _
    // Predicated region
    $region14: #{tpu_custom_call.1} parent=1 // pred_check
      _
    $region15: #{tpu_custom_call.1} parent=1 // pred_check_branch
      %38 = sbr.rel (0) target = $region17
    $region16: #{tpu_custom_call.1} parent=1 // pred_region
      %s40 = ssub.s32 4096, 4096
      %41 = vsyncadd [#allocation6], %s40
      %s42 = sshll.u32 [#allocation7], 4
      %s43 = int_to_ptr.vmem [resolvable:$true] %s42
      %48 = dma.hbm_to_vmem [thread:$0]  %s3, 4096, %s43, [#allocation6], 128, 128, 8
    $region17: #{tpu_custom_call.1} parent=1 // pred_fallthru
      _
    // Predicated region
    $region18: #{tpu_custom_call.1} parent=1 // pred_check
      _
    $region19: #{tpu_custom_call.1} parent=1 // pred_check_branch
      %50 = sbr.rel (0) target = $region21
    $region20: #{tpu_custom_call.1} parent=1 // pred_region
      _
    $region21: #{tpu_custom_call.1} parent=1 // pred_fallthru
      _
    // Predicated region
    $region22: #{tpu_custom_call.1} parent=1 // pred_check
      _
    $region23: #{tpu_custom_call.1} parent=1 // pred_check_branch
      %52 = sbr.rel (0) target = $region25
    $region24: #{tpu_custom_call.1} parent=1 // pred_region
      %53 = dma.done [#allocation3], 128
    $region25: #{tpu_custom_call.1} parent=1 // pred_fallthru
      _
    // Predicated region
    $region26: #{tpu_custom_call.1} parent=1 // pred_check
      _
    $region27: #{tpu_custom_call.1} parent=1 // pred_check_branch
      %55 = sbr.rel (0) target = $region29
    $region28: #{tpu_custom_call.1} parent=1 // pred_region
      %56 = dma.done [#allocation6], 14336
    $region29: #{tpu_custom_call.1} parent=1 // pred_fallthru
      _
    // Predicated region
    $region30: #{tpu_custom_call.1} parent=1 // pred_check
      _
    $region31: #{tpu_custom_call.1} parent=1 // pred_check_branch
      %58 = sbr.rel (0) target = $region33
    $region32: #{tpu_custom_call.1} parent=1 // pred_region
      %59 = dma.done [#allocation6], 4096
    $region33: #{tpu_custom_call.1} parent=1 // pred_fallthru
      _
    %v60 = vld [vmem:[#allocation2] sm:$0xff]
    %v61 = vld [vmem:[#allocation5] sm:$0xff]
    %v62 = vld [vmem:[#allocation5 + $0x8] sm:$0xff]
    %v63 = vld [vmem:[#allocation5 + $0x10] sm:$0xff]
    %v64 = vld [vmem:[#allocation5 + $0x18] sm:$0xff]
    %v65 = vld [vmem:[#allocation5 + $0x20] sm:$0xff]
    %v66 = vld [vmem:[#allocation5 + $0x28] sm:$0xff]
    %v67 = vld [vmem:[#allocation5 + $0x30] sm:$0xff]
    %v68 = vld [vmem:[#allocation5 + $0x38] sm:$0xff]
    %v69 = vld [vmem:[#allocation5 + $0x40] sm:$0xff]
    %v70 = vld [vmem:[#allocation5 + $0x48] sm:$0xff]
    %v71 = vld [vmem:[#allocation5 + $0x50] sm:$0xff]
    %v72 = vld [vmem:[#allocation5 + $0x58] sm:$0xff]
    %v73 = vld [vmem:[#allocation5 + $0x60] sm:$0xff]
    %v74 = vld [vmem:[#allocation5 + $0x68] sm:$0xff]
    %v75 = vld [vmem:[#allocation5 + $0x70] sm:$0xff]
    %v76 = vld [vmem:[#allocation5 + $0x78] sm:$0xff]
    %v77 = vld [vmem:[#allocation5 + $0x80] sm:$0xff]
    %v78 = vld [vmem:[#allocation5 + $0x88] sm:$0xff]
    %v79 = vld [vmem:[#allocation5 + $0x90] sm:$0xff]
    %v80 = vld [vmem:[#allocation5 + $0x98] sm:$0xff]
    %v81 = vld [vmem:[#allocation5 + $0xa0] sm:$0xff]
    %v82 = vld [vmem:[#allocation5 + $0xa8] sm:$0xff]
    %v83 = vld [vmem:[#allocation5 + $0xb0] sm:$0xff]
    %v84 = vld [vmem:[#allocation5 + $0xb8] sm:$0xff]
    %v85 = vld [vmem:[#allocation5 + $0xc0] sm:$0xff]
    %v86 = vld [vmem:[#allocation5 + $0xc8] sm:$0xff]
    %v87 = vld [vmem:[#allocation5 + $0xd0] sm:$0xff]
    %v88 = vld [vmem:[#allocation5 + $0xd8] sm:$0xff]
    %v89 = vld [vmem:[#allocation5 + $0xe0] sm:$0xff]
    %v90 = vld [vmem:[#allocation5 + $0xe8] sm:$0xff]
    %v91 = vld [vmem:[#allocation5 + $0xf0] sm:$0xff]
    %v92 = vld [vmem:[#allocation5 + $0xf8] sm:$0xff]
    %v93 = vld [vmem:[#allocation5 + $0x100] sm:$0xff]
    %v94 = vld [vmem:[#allocation5 + $0x108] sm:$0xff]
    %v95 = vld [vmem:[#allocation5 + $0x110] sm:$0xff]
    %v96 = vld [vmem:[#allocation5 + $0x118] sm:$0xff]
    %v97 = vld [vmem:[#allocation5 + $0x120] sm:$0xff]
    %v98 = vld [vmem:[#allocation5 + $0x128] sm:$0xff]
    %v99 = vld [vmem:[#allocation5 + $0x130] sm:$0xff]
    %v100 = vld [vmem:[#allocation5 + $0x138] sm:$0xff]
    %v101 = vld [vmem:[#allocation5 + $0x140] sm:$0xff]
    %v102 = vld [vmem:[#allocation5 + $0x148] sm:$0xff]
    %v103 = vld [vmem:[#allocation5 + $0x150] sm:$0xff]
    %v104 = vld [vmem:[#allocation5 + $0x158] sm:$0xff]
    %v105 = vld [vmem:[#allocation5 + $0x160] sm:$0xff]
    %v106 = vld [vmem:[#allocation5 + $0x168] sm:$0xff]
    %v107 = vld [vmem:[#allocation5 + $0x170] sm:$0xff]
    %v108 = vld [vmem:[#allocation5 + $0x178] sm:$0xff]
    %v109 = vld [vmem:[#allocation5 + $0x180] sm:$0xff]
    %v110 = vld [vmem:[#allocation5 + $0x188] sm:$0xff]
    %v111 = vld [vmem:[#allocation5 + $0x190] sm:$0xff]
    %v112 = vld [vmem:[#allocation5 + $0x198] sm:$0xff]
    %v113 = vld [vmem:[#allocation5 + $0x1a0] sm:$0xff]
    %v114 = vld [vmem:[#allocation5 + $0x1a8] sm:$0xff]
    %v115 = vld [vmem:[#allocation5 + $0x1b0] sm:$0xff]
    %v116 = vld [vmem:[#allocation5 + $0x1b8] sm:$0xff]
    %v117 = vld [vmem:[#allocation5 + $0x1c0] sm:$0xff]
    %v118 = vld [vmem:[#allocation5 + $0x1c8] sm:$0xff]
    %v119 = vld [vmem:[#allocation5 + $0x1d0] sm:$0xff]
    %v120 = vld [vmem:[#allocation5 + $0x1d8] sm:$0xff]
    %v121 = vld [vmem:[#allocation5 + $0x1e0] sm:$0xff]
    %v122 = vld [vmem:[#allocation5 + $0x1e8] sm:$0xff]
    %v123 = vld [vmem:[#allocation5 + $0x1f0] sm:$0xff]
    %v124 = vld [vmem:[#allocation5 + $0x1f8] sm:$0xff]
    %v125 = vld [vmem:[#allocation5 + $0x200] sm:$0xff]
    %v126 = vld [vmem:[#allocation5 + $0x208] sm:$0xff]
    %v127 = vld [vmem:[#allocation5 + $0x210] sm:$0xff]
    %v128 = vld [vmem:[#allocation5 + $0x218] sm:$0xff]
    %v129 = vld [vmem:[#allocation5 + $0x220] sm:$0xff]
    %v130 = vld [vmem:[#allocation5 + $0x228] sm:$0xff]
    %v131 = vld [vmem:[#allocation5 + $0x230] sm:$0xff]
    %v132 = vld [vmem:[#allocation5 + $0x238] sm:$0xff]
    %v133 = vld [vmem:[#allocation5 + $0x240] sm:$0xff]
    %v134 = vld [vmem:[#allocation5 + $0x248] sm:$0xff]
    %v135 = vld [vmem:[#allocation5 + $0x250] sm:$0xff]
    %v136 = vld [vmem:[#allocation5 + $0x258] sm:$0xff]
    %v137 = vld [vmem:[#allocation5 + $0x260] sm:$0xff]
    %v138 = vld [vmem:[#allocation5 + $0x268] sm:$0xff]
    %v139 = vld [vmem:[#allocation5 + $0x270] sm:$0xff]
    %v140 = vld [vmem:[#allocation5 + $0x278] sm:$0xff]
    %v141 = vld [vmem:[#allocation5 + $0x280] sm:$0xff]
    %v142 = vld [vmem:[#allocation5 + $0x288] sm:$0xff]
    %v143 = vld [vmem:[#allocation5 + $0x290] sm:$0xff]
    %v144 = vld [vmem:[#allocation5 + $0x298] sm:$0xff]
    %v145 = vld [vmem:[#allocation5 + $0x2a0] sm:$0xff]
    %v146 = vld [vmem:[#allocation5 + $0x2a8] sm:$0xff]
    %v147 = vld [vmem:[#allocation5 + $0x2b0] sm:$0xff]
    %v148 = vld [vmem:[#allocation5 + $0x2b8] sm:$0xff]
    %v149 = vld [vmem:[#allocation5 + $0x2c0] sm:$0xff]
    %v150 = vld [vmem:[#allocation5 + $0x2c8] sm:$0xff]
    %v151 = vld [vmem:[#allocation5 + $0x2d0] sm:$0xff]
    %v152 = vld [vmem:[#allocation5 + $0x2d8] sm:$0xff]
    %v153 = vld [vmem:[#allocation5 + $0x2e0] sm:$0xff]
    %v154 = vld [vmem:[#allocation5 + $0x2e8] sm:$0xff]
    %v155 = vld [vmem:[#allocation5 + $0x2f0] sm:$0xff]
    %v156 = vld [vmem:[#allocation5 + $0x2f8] sm:$0xff]
    %v157 = vld [vmem:[#allocation5 + $0x300] sm:$0xff]
    %v158 = vld [vmem:[#allocation5 + $0x308] sm:$0xff]
    %v159 = vld [vmem:[#allocation5 + $0x310] sm:$0xff]
    %v160 = vld [vmem:[#allocation5 + $0x318] sm:$0xff]
    %v161 = vld [vmem:[#allocation5 + $0x320] sm:$0xff]
    %v162 = vld [vmem:[#allocation5 + $0x328] sm:$0xff]
    %v163 = vld [vmem:[#allocation5 + $0x330] sm:$0xff]
    %v164 = vld [vmem:[#allocation5 + $0x338] sm:$0xff]
    %v165 = vld [vmem:[#allocation5 + $0x340] sm:$0xff]
    %v166 = vld [vmem:[#allocation5 + $0x348] sm:$0xff]
    %v167 = vld [vmem:[#allocation5 + $0x350] sm:$0xff]
    %v168 = vld [vmem:[#allocation5 + $0x358] sm:$0xff]
    %v169 = vld [vmem:[#allocation5 + $0x360] sm:$0xff]
    %v170 = vld [vmem:[#allocation5 + $0x368] sm:$0xff]
    %v171 = vld [vmem:[#allocation5 + $0x370] sm:$0xff]
    %v172 = vld [vmem:[#allocation5 + $0x378] sm:$0xff]
    %v173 = vld [vmem:[%s2] sm:$0x3]
    %v175 = vlaneseq
    %v176 = vshrl.u32 %v175, 7
    %v177 = vsub.s32 0, %v176
    %v178 = vrot.slane %v173, %v177
    %v179 = vlaneseq
    %v180 = vshrl.u32 %v179, 7
    %v181 = vsub.s32 1, %v180
    %v182 = vrot.slane %v173, %v181
    %v186 = vcombine.high %v60, %v60
    %v188 = vunpack.c.l.s4 1983009808
    %v189 = vunpack.c.0.s8 %v188
    %v190 = vlaneseq
    %v191 = vshrl.u32 %v190, 7
    %v192 = vsub.s32 %v189, %v191
    %v193 = vrot.slane %v60, %v192
    %v195 = vunpack.c.l.s4 1983009808
    %v196 = vunpack.c.0.s8 %v195
    %v197 = vlaneseq
    %v198 = vshrl.u32 %v197, 7
    %v199 = vsub.s32 %v196, %v198
    %v200 = vrot.slane %v186, %v199
    %v201 = vcombine.high %v193, %v193
    %v202 = vcombine.high %v200, %v200
    %vm206 = vcmask 523264
    %v207 = vsel %vm206, %v202, 0
    %209 = vmatprep.subr.mxu0 %v92
    %210 = vmatpush1.msra.mxu0 %v91
    %211 = vmatprep.subr.mxu0 %v90
    %212 = vmatpush1.msra.mxu0 %v89
    %213 = vmatprep.subr.mxu0 %v88
    %214 = vmatpush1.msra.mxu0 %v87
    %215 = vmatprep.subr.mxu0 %v86
    %216 = vmatpush1.msra.mxu0 %v85
    %217 = vmatprep.subr.mxu0 %v84
    %218 = vmatpush1.msra.mxu0 %v83
    %219 = vmatprep.subr.mxu0 %v82
    %220 = vmatpush1.msra.mxu0 %v81
    %221 = vmatprep.subr.mxu0 %v80
    %222 = vmatpush1.msra.mxu0 %v79
    %223 = vmatprep.subr.mxu0 %v78
    %224 = vmatpush1.msra.mxu0 %v77
    %225 = vmatprep.subr.mxu0 %v76
    %226 = vmatpush1.msra.mxu0 %v75
    %227 = vmatprep.subr.mxu0 %v74
    %228 = vmatpush1.msra.mxu0 %v73
    %229 = vmatprep.subr.mxu0 %v72
    %230 = vmatpush1.msra.mxu0 %v71
    %231 = vmatprep.subr.mxu0 %v70
    %232 = vmatpush1.msra.mxu0 %v69
    %233 = vmatprep.subr.mxu0 %v68
    %234 = vmatpush1.msra.mxu0 %v67
    %235 = vmatprep.subr.mxu0 %v66
    %236 = vmatpush1.msra.mxu0 %v65
    %237 = vmatprep.subr.mxu0 %v64
    %238 = vmatpush1.msra.mxu0 %v63
    %239 = vmatprep.subr.mxu0 %v62
    %240 = vmatpush1.msra.mxu0 %v61
    %241 = vmatprep.subr.mxu0 %v124
    %242 = vmatpush2.msra.mxu0 %v123
    %243 = vmatprep.subr.mxu0 %v122
    %244 = vmatpush2.msra.mxu0 %v121
    %245 = vmatprep.subr.mxu0 %v120
    %246 = vmatpush2.msra.mxu0 %v119
    %247 = vmatprep.subr.mxu0 %v118
    %248 = vmatpush2.msra.mxu0 %v117
    %249 = vmatprep.subr.mxu0 %v116
    %250 = vmatpush2.msra.mxu0 %v115
    %251 = vmatprep.subr.mxu0 %v114
    %252 = vmatpush2.msra.mxu0 %v113
    %253 = vmatprep.subr.mxu0 %v112
    %254 = vmatpush2.msra.mxu0 %v111
    %255 = vmatprep.subr.mxu0 %v110
    %256 = vmatpush2.msra.mxu0 %v109
    %257 = vmatprep.subr.mxu0 %v108
    %258 = vmatpush2.msra.mxu0 %v107
    %259 = vmatprep.subr.mxu0 %v106
    %260 = vmatpush2.msra.mxu0 %v105
    %261 = vmatprep.subr.mxu0 %v104
    %262 = vmatpush2.msra.mxu0 %v103
    %263 = vmatprep.subr.mxu0 %v102
    %264 = vmatpush2.msra.mxu0 %v101
    %265 = vmatprep.subr.mxu0 %v100
    %266 = vmatpush2.msra.mxu0 %v99
    %267 = vmatprep.subr.mxu0 %v98
    %268 = vmatpush2.msra.mxu0 %v97
    %269 = vmatprep.subr.mxu0 %v96
    %270 = vmatpush2.msra.mxu0 %v95
    %271 = vmatprep.subr.mxu0 %v94
    %272 = vmatpush2.msra.mxu0 %v93
    %273 = vmatprep.mubr.f32.mxu0 %v201
    %274 = vmatmul.mubr.f32.gmra.mxu0 %v193
    %v275 = vpop.f32.mrf.mxu0
    %v276 = vadd.f32 %v178, %v275
    %v277 = vpop.f32.mrf.mxu0
    %v278 = vadd.f32 %v182, %v277
    %279 = vdwg.mxu0
    %280 = vmatprep.subr.mxu0 %v156
    %281 = vmatpush1.msra.mxu0 %v155
    %282 = vmatprep.subr.mxu0 %v154
    %283 = vmatpush1.msra.mxu0 %v153
    %284 = vmatprep.subr.mxu0 %v152
    %285 = vmatpush1.msra.mxu0 %v151
    %286 = vmatprep.subr.mxu0 %v150
    %287 = vmatpush1.msra.mxu0 %v149
    %288 = vmatprep.subr.mxu0 %v148
    %289 = vmatpush1.msra.mxu0 %v147
    %290 = vmatprep.subr.mxu0 %v146
    %291 = vmatpush1.msra.mxu0 %v145
    %292 = vmatprep.subr.mxu0 %v144
    %293 = vmatpush1.msra.mxu0 %v143
    %294 = vmatprep.subr.mxu0 %v142
    %295 = vmatpush1.msra.mxu0 %v141
    %296 = vmatprep.subr.mxu0 %v140
    %297 = vmatpush1.msra.mxu0 %v139
    %298 = vmatprep.subr.mxu0 %v138
    %299 = vmatpush1.msra.mxu0 %v137
    %300 = vmatprep.subr.mxu0 %v136
    %301 = vmatpush1.msra.mxu0 %v135
    %302 = vmatprep.subr.mxu0 %v134
    %303 = vmatpush1.msra.mxu0 %v133
    %304 = vmatprep.subr.mxu0 %v132
    %305 = vmatpush1.msra.mxu0 %v131
    %306 = vmatprep.subr.mxu0 %v130
    %307 = vmatpush1.msra.mxu0 %v129
    %308 = vmatprep.subr.mxu0 %v128
    %309 = vmatpush1.msra.mxu0 %v127
    %310 = vmatprep.subr.mxu0 %v126
    %311 = vmatpush1.msra.mxu0 %v125
    %312 = vmatprep.subr.mxu0 0.0
    %313 = vmatpush2.msra.mxu0 0.0
    %314 = vmatprep.subr.mxu0 0.0
    %315 = vmatpush2.msra.mxu0 0.0
    %316 = vmatprep.subr.mxu0 0.0
    %317 = vmatpush2.msra.mxu0 0.0
    %318 = vmatprep.subr.mxu0 0.0
    %319 = vmatpush2.msra.mxu0 0.0
    %320 = vmatprep.subr.mxu0 0.0
    %321 = vmatpush2.msra.mxu0 0.0
    %322 = vmatprep.subr.mxu0 0.0
    %323 = vmatpush2.msra.mxu0 0.0
    %324 = vmatprep.subr.mxu0 0.0
    %325 = vmatpush2.msra.mxu0 0.0
    %326 = vmatprep.subr.mxu0 0.0
    %327 = vmatpush2.msra.mxu0 0.0
    %328 = vmatprep.subr.mxu0 %v172
    %329 = vmatpush2.msra.mxu0 %v171
    %330 = vmatprep.subr.mxu0 %v170
    %331 = vmatpush2.msra.mxu0 %v169
    %332 = vmatprep.subr.mxu0 %v168
    %333 = vmatpush2.msra.mxu0 %v167
    %334 = vmatprep.subr.mxu0 %v166
    %335 = vmatpush2.msra.mxu0 %v165
    %336 = vmatprep.subr.mxu0 %v164
    %337 = vmatpush2.msra.mxu0 %v163
    %338 = vmatprep.subr.mxu0 %v162
    %339 = vmatpush2.msra.mxu0 %v161
    %340 = vmatprep.subr.mxu0 %v160
    %341 = vmatpush2.msra.mxu0 %v159
    %342 = vmatprep.subr.mxu0 %v158
    %343 = vmatpush2.msra.mxu0 %v157
    %344 = vmatprep.mubr.f32.mxu0 %v207
    %345 = vmatmul.mubr.f32.gmra.mxu0 %v200
    %v346 = vpop.f32.mrf.mxu0
    %v347 = vadd.f32 %v276, %v346
    %v348 = vpop.f32.mrf.mxu0
    %v349 = vadd.f32 %v278, %v348
    %350 = vdwg.mxu0
    %v351 = vld [vmem:[#allocation7] sm:$0xff]
    %v352 = vld [vmem:[#allocation7 + $0x8] sm:$0xff]
    %v353 = vld [vmem:[#allocation7 + $0x10] sm:$0xff]
    %v354 = vld [vmem:[#allocation7 + $0x18] sm:$0xff]
    %v355 = vld [vmem:[#allocation7 + $0x20] sm:$0xff]
    %v356 = vld [vmem:[#allocation7 + $0x28] sm:$0xff]
    %v357 = vld [vmem:[#allocation7 + $0x30] sm:$0xff]
    %v358 = vld [vmem:[#allocation7 + $0x38] sm:$0xff]
    %v359 = vld [vmem:[#allocation7 + $0x40] sm:$0xff]
    %v360 = vld [vmem:[#allocation7 + $0x48] sm:$0xff]
    %v361 = vld [vmem:[#allocation7 + $0x50] sm:$0xff]
    %v362 = vld [vmem:[#allocation7 + $0x58] sm:$0xff]
    %v363 = vld [vmem:[#allocation7 + $0x60] sm:$0xff]
    %v364 = vld [vmem:[#allocation7 + $0x68] sm:$0xff]
    %v365 = vld [vmem:[#allocation7 + $0x70] sm:$0xff]
    %v366 = vld [vmem:[#allocation7 + $0x78] sm:$0xff]
    %v367 = vld [vmem:[#allocation7 + $0x80] sm:$0xff]
    %v368 = vld [vmem:[#allocation7 + $0x88] sm:$0xff]
    %v369 = vld [vmem:[#allocation7 + $0x90] sm:$0xff]
    %v370 = vld [vmem:[#allocation7 + $0x98] sm:$0xff]
    %v371 = vld [vmem:[#allocation7 + $0xa0] sm:$0xff]
    %v372 = vld [vmem:[#allocation7 + $0xa8] sm:$0xff]
    %v373 = vld [vmem:[#allocation7 + $0xb0] sm:$0xff]
    %v374 = vld [vmem:[#allocation7 + $0xb8] sm:$0xff]
    %v375 = vld [vmem:[#allocation7 + $0xc0] sm:$0xff]
    %v376 = vld [vmem:[#allocation7 + $0xc8] sm:$0xff]
    %v377 = vld [vmem:[#allocation7 + $0xd0] sm:$0xff]
    %v378 = vld [vmem:[#allocation7 + $0xd8] sm:$0xff]
    %v379 = vld [vmem:[#allocation7 + $0xe0] sm:$0xff]
    %v380 = vld [vmem:[#allocation7 + $0xe8] sm:$0xff]
    %v381 = vld [vmem:[#allocation7 + $0xf0] sm:$0xff]
    %v382 = vld [vmem:[#allocation7 + $0xf8] sm:$0xff]
    %v383 = vld [vmem:[%s4] sm:$0x1]
    %v385 = vlaneseq
    %v386 = vshrl.u32 %v385, 7
    %v387 = vsub.s32 0, %v386
    %v388 = vrot.slane %v383, %v387
    %390 = vmatprep.subr.mxu0 0.0
    %391 = vmatpush1.msra.mxu0 %v366
    %392 = vmatprep.subr.mxu0 0.0
    %393 = vmatpush1.msra.mxu0 %v365
    %394 = vmatprep.subr.mxu0 0.0
    %395 = vmatpush1.msra.mxu0 %v364
    %396 = vmatprep.subr.mxu0 0.0
    %397 = vmatpush1.msra.mxu0 %v363
    %398 = vmatprep.subr.mxu0 0.0
    %399 = vmatpush1.msra.mxu0 %v362
    %400 = vmatprep.subr.mxu0 0.0
    %401 = vmatpush1.msra.mxu0 %v361
    %402 = vmatprep.subr.mxu0 0.0
    %403 = vmatpush1.msra.mxu0 %v360
    %404 = vmatprep.subr.mxu0 0.0
    %405 = vmatpush1.msra.mxu0 %v359
    %406 = vmatprep.subr.mxu0 0.0
    %407 = vmatpush1.msra.mxu0 %v358
    %408 = vmatprep.subr.mxu0 0.0
    %409 = vmatpush1.msra.mxu0 %v357
    %410 = vmatprep.subr.mxu0 0.0
    %411 = vmatpush1.msra.mxu0 %v356
    %412 = vmatprep.subr.mxu0 0.0
    %413 = vmatpush1.msra.mxu0 %v355
    %414 = vmatprep.subr.mxu0 0.0
    %415 = vmatpush1.msra.mxu0 %v354
    %416 = vmatprep.subr.mxu0 0.0
    %417 = vmatpush1.msra.mxu0 %v353
    %418 = vmatprep.subr.mxu0 0.0
    %419 = vmatpush1.msra.mxu0 %v352
    %420 = vmatprep.subr.mxu0 0.0
    %421 = vmatpush1.msra.mxu0 %v351
    %422 = vmatprep.subr.mxu0 0.0
    %423 = vmatpush2.msra.mxu0 %v382
    %424 = vmatprep.subr.mxu0 0.0
    %425 = vmatpush2.msra.mxu0 %v381
    %426 = vmatprep.subr.mxu0 0.0
    %427 = vmatpush2.msra.mxu0 %v380
    %428 = vmatprep.subr.mxu0 0.0
    %429 = vmatpush2.msra.mxu0 %v379
    %430 = vmatprep.subr.mxu0 0.0
    %431 = vmatpush2.msra.mxu0 %v378
    %432 = vmatprep.subr.mxu0 0.0
    %433 = vmatpush2.msra.mxu0 %v377
    %434 = vmatprep.subr.mxu0 0.0
    %435 = vmatpush2.msra.mxu0 %v376
    %436 = vmatprep.subr.mxu0 0.0
    %437 = vmatpush2.msra.mxu0 %v375
    %438 = vmatprep.subr.mxu0 0.0
    %439 = vmatpush2.msra.mxu0 %v374
    %440 = vmatprep.subr.mxu0 0.0
    %441 = vmatpush2.msra.mxu0 %v373
    %442 = vmatprep.subr.mxu0 0.0
    %443 = vmatpush2.msra.mxu0 %v372
    %444 = vmatprep.subr.mxu0 0.0
    %445 = vmatpush2.msra.mxu0 %v371
    %446 = vmatprep.subr.mxu0 0.0
    %447 = vmatpush2.msra.mxu0 %v370
    %448 = vmatprep.subr.mxu0 0.0
    %449 = vmatpush2.msra.mxu0 %v369
    %450 = vmatprep.subr.mxu0 0.0
    %451 = vmatpush2.msra.mxu0 %v368
    %452 = vmatprep.subr.mxu0 0.0
    %453 = vmatpush2.msra.mxu0 %v367
    %454 = vmatprep.mubr.f32.mxu0 %v349
    %455 = vmatmul.mubr.f32.gmra.mxu0 %v347
    %v456 = vpop.f32.mrf.mxu0
    %v457 = vadd.f32 %v388, %v456
    %v458 = vpop.f32.mrf.mxu0
    %459 = vdwg.mxu0
    %460 = vst [vmem:[#allocation8] sm:$0x3] %v457
    // Predicated region
    $region34: #{tpu_custom_call.1} parent=1 // pred_check
      _
    $region35: #{tpu_custom_call.1} parent=1 // pred_check_branch
      %462 = sbr.rel (0) target = $region37
    $region36: #{tpu_custom_call.1} parent=1 // pred_region
      %s464 = ssub.s32 32, 32
      %465 = vsyncadd [#allocation4], %s464
      %s467 = sshll.u32 [#allocation8], 4
      %s468 = int_to_ptr.vmem [resolvable:$true] %s467
      %470 = dma.vmem_to_hbm [thread:$0]  %s468, 32, %s5, [#allocation4]
    $region37: #{tpu_custom_call.1} parent=1 // pred_fallthru
      _
    // Predicated region
    $region38: #{tpu_custom_call.1} parent=1 // pred_check
      _
    $region39: #{tpu_custom_call.1} parent=1 // pred_check_branch
      %472 = sbr.rel (0) target = $region41
    $region40: #{tpu_custom_call.1} parent=1 // pred_region
      %473 = dma.done [#allocation4], 32
    $region41: #{tpu_custom_call.1} parent=1 // pred_fallthru
      _
    %474 = vsyncpa [#allocation3], 1
    %475 = vsyncpa [#allocation6], 1
    %476 = vsyncpa [#allocation4], 1

</llo_original>
